<compile_context>
chip_gen: v7x
topology: tpu7x:2x2x1
jax: 0.10.0
libtpu: 0.0.40
codegen_flags: <defaults>
</compile_context>

<pallas_src>
import functools

import jax
import jax.numpy as jnp
from jax import lax
from jax.experimental import pallas as pl
from jax.experimental.pallas import tpu as pltpu

BN_EPS = 1e-5
LANE = 128


# --------------------------------------------------------------------------
# Kernel
# --------------------------------------------------------------------------
def _bottleneck_kernel(x_ref, w1_ref, w2_ref, w3_ref, w4_ref, p_ref, slab_ref,
                       *, d0, d1, d2p):
    # p_ref: (2, d1 + d2p + d1 + d0) f32; row 0 = gamma, row 1 = beta.
    seg = (
        (0, d1),                               # layer 1: squeeze 512 -> 128
        (d1, d1 + d2p),                        # layer 2: squeeze 128 -> 32 (padded to 128)
        (d1 + d2p, d1 + d2p + d1),             # layer 3: unsqueeze 32 -> 128
        (d1 + d2p + d1, d1 + d2p + d1 + d0),   # layer 4: unsqueeze 128 -> 512
    )

    def layer(h, w_ref, s, relu):
        lo, hi = s
        g = p_ref[0:1, lo:hi]
        be = p_ref[1:2, lo:hi]
        # bf16 weights straight from HBM, bf16 activation operand, f32 accum.
        y = jnp.dot(h.astype(jnp.bfloat16), w_ref[...],
                    preferred_element_type=jnp.float32)
        inv_n = 1.0 / y.shape[0]
        mean = jnp.sum(y, axis=0, keepdims=True) * inv_n
        d = y - mean
        var = jnp.sum(d * d, axis=0, keepdims=True) * inv_n   # biased, two-pass
        scale = g * lax.rsqrt(var + BN_EPS)                   # rsqrt -> EUP slot
        shift = be - mean * scale
        out = y * scale + shift                               # 2 VPU ops on (N, D)
        if relu:
            out = jnp.maximum(out, 0.0)
        return out

    x = x_ref[...]

    # ---- squeeze path ----
    h = layer(x, w1_ref, seg[0], relu=True)
    f = layer(h, w2_ref, seg[1], relu=False)   # lanes [d2:d2p] are exactly 0

    # ---- unsqueeze path ----
    u = layer(f, w3_ref, seg[2], relu=True)
    o = layer(u, w4_ref, seg[3], relu=False)

    # Lane-dense single output slab: [feat (padded to d2p) | reconstruction].
    slab_ref[:, 0:d2p] = f.astype(slab_ref.dtype)
    slab_ref[:, d2p:d2p + d0] = o.astype(slab_ref.dtype)


# --------------------------------------------------------------------------
# Wrapper
# --------------------------------------------------------------------------
def _full_spec(shape):
    # Whole-array block; grid is (1,), so the index map returns zeros.
    return pl.BlockSpec(shape, lambda i, n=len(shape): (0,) * n)


@functools.partial(jax.jit, static_argnames=("feat_dim",))
def bottleneck_forward(x, params, *, feat_dim):
    """params: dict with bf16 w1..w4 (in, out; w2/w3 lane-padded) and packed
    f32 p (2, d1 + d2p + d1 + d0). Returns (feat, out)."""
    N, d0 = x.shape
    d1 = params["w1"].shape[1]
    d2p = params["w2"].shape[1]

    kernel = functools.partial(_bottleneck_kernel, d0=d0, d1=d1, d2p=d2p)
    args = (x, params["w1"], params["w2"], params["w3"], params["w4"],
            params["p"])

    slab = pl.pallas_call(
        kernel,
        grid=(1,),
        in_specs=[_full_spec(a.shape) for a in args],
        out_specs=_full_spec((N, d2p + d0)),
        out_shape=jax.ShapeDtypeStruct((N, d2p + d0), jnp.float32),
        compiler_params=pltpu.CompilerParams(
            dimension_semantics=("arbitrary",),
        ),
    )(*args)

    feat = slab[:, :feat_dim]   # slice off the lane padding (free plumbing)
    out = slab[:, d2p:]
    return feat, out


# --------------------------------------------------------------------------
# Parameter construction
# --------------------------------------------------------------------------
def init_params(key, dims=(512, 128, 32)):
    """Deterministic PyTorch-style raw params (f32, weights as (in, out))."""
    d0, d1, d2 = dims
    ks = jax.random.split(key, 8)

    def lin(k, din, dout):
        kw, kb = jax.random.split(k)
        bound = 1.0 / jnp.sqrt(din)
        w = jax.random.uniform(kw, (din, dout), jnp.float32, -bound, bound)
        b = jax.random.uniform(kb, (1, dout), jnp.float32, -bound, bound)
        return w, b

    def bn(k, d):
        kg, kb = jax.random.split(k)
        g = 1.0 + 0.1 * jax.random.normal(kg, (1, d), jnp.float32)
        be = 0.1 * jax.random.normal(kb, (1, d), jnp.float32)
        return g, be

    w1, b1 = lin(ks[0], d0, d1); g1, be1 = bn(ks[1], d1)
    w2, b2 = lin(ks[2], d1, d2); g2, be2 = bn(ks[3], d2)
    w3, b3 = lin(ks[4], d2, d1); g3, be3 = bn(ks[5], d1)
    w4, b4 = lin(ks[6], d1, d0); g4, be4 = bn(ks[7], d0)

    return dict(w1=w1, b1=b1, g1=g1, be1=be1,
                w2=w2, b2=b2, g2=g2, be2=be2,
                w3=w3, b3=b3, g3=g3, be3=be3,
                w4=w4, b4=b4, g4=g4, be4=be4)


def prepare_params(raw, dims=(512, 128, 32)):
    """One-time wrapper-side prep: bf16 weights, lane-pad the 32-wide
    bottleneck to 128, pack all gamma/beta into one (2, 896) array. Linear
    biases are dropped (exactly cancelled by training-mode BatchNorm)."""
    d0, d1, d2 = dims
    d2p = ((d2 + LANE - 1) // LANE) * LANE

    w1 = raw["w1"].astype(jnp.bfloat16)
    w2 = jnp.zeros((d1, d2p), jnp.float32).at[:, :d2].set(raw["w2"]).astype(jnp.bfloat16)
    w3 = jnp.zeros((d2p, d1), jnp.float32).at[:d2, :].set(raw["w3"]).astype(jnp.bfloat16)
    w4 = raw["w4"].astype(jnp.bfloat16)

    pad2 = lambda v: jnp.pad(v, ((0, 0), (0, d2p - d2)))
    g_row = jnp.concatenate([raw["g1"], pad2(raw["g2"]), raw["g3"], raw["g4"]], axis=1)
    b_row = jnp.concatenate([raw["be1"], pad2(raw["be2"]), raw["be3"], raw["be4"]], axis=1)
    p = jnp.concatenate([g_row, b_row], axis=0)   # (2, d1 + d2p + d1 + d0)

    return dict(w1=w1, w2=w2, w3=w3, w4=w4, p=p)


# --------------------------------------------------------------------------
# References
# --------------------------------------------------------------------------
def _layer_matched(h, w, g, be, relu):
    """Same math as the kernel (bf16 MXU operands, no bias, two-pass BN)."""
    y = jnp.dot(h.astype(jnp.bfloat16), w.astype(jnp.bfloat16),
                preferred_element_type=jnp.float32)
    mean = jnp.mean(y, axis=0, keepdims=True)
    var = jnp.mean((y - mean) ** 2, axis=0, keepdims=True)
    out = (y - mean) * lax.rsqrt(var + BN_EPS) * g + be
    return jnp.maximum(out, 0.0) if relu else out


def _reference_matched(x, r):
    h = _layer_matched(x, r["w1"], r["g1"], r["be1"], True)
    f = _layer_matched(h, r["w2"], r["g2"], r["be2"], False)
    u = _layer_matched(f, r["w3"], r["g3"], r["be3"], True)
    o = _layer_matched(u, r["w4"], r["g4"], r["be4"], False)
    return f, o


def _layer_f32(h, w, b, g, be, relu):
    y = h @ w + b
    mean = jnp.mean(y, axis=0, keepdims=True)
    var = jnp.mean((y - mean) ** 2, axis=0, keepdims=True)
    out = (y - mean) * lax.rsqrt(var + BN_EPS) * g + be
    return jnp.maximum(out, 0.0) if relu else out


def _reference_f32(x, r):
    """Pure-JAX mirror of the PyTorch forward (f32, with Linear bias)."""
    h = _layer_f32(x, r["w1"], r["b1"], r["g1"], r["be1"], True)
    f = _layer_f32(h, r["w2"], r["b2"], r["g2"], r["be2"], False)
    u = _layer_f32(f, r["w3"], r["b3"], r["g3"], r["be3"], True)
    o = _layer_f32(u, r["w4"], r["b4"], r["g4"], r["be4"], False)
    return f, o


# --------------------------------------------------------------------------
# Demo / self-check
# --------------------------------------------------------------------------
if __name__ == "__main__":
    key = jax.random.PRNGKey(0)
    k_x, k_p = jax.random.split(key)

    dims = (512, 128, 32)   # module defaults
    batch = 8               # small batch, aligned to 8 sublanes

    x = jax.random.normal(k_x, (batch, dims[0]), jnp.float32)
    raw = init_params(k_p, dims)
    params = prepare_params(raw, dims)

    feat, out = bottleneck_forward(x, params, feat_dim=dims[2])
    jax.block_until_ready((feat, out))
    assert feat.shape == (batch, dims[2]) and out.shape == (batch, dims[0])

    # Tight check vs a reference using the same bf16-operand MXU dots / math.
    feat_m, out_m = _reference_matched(x, raw)
    assert jnp.allclose(feat, feat_m, atol=2e-3, rtol=2e-3), (
        float(jnp.max(jnp.abs(feat - feat_m))))
    assert jnp.allclose(out, out_m, atol=2e-3, rtol=2e-3), (
        float(jnp.max(jnp.abs(out - out_m))))

    # Loose semantic check vs the full-f32 PyTorch-style reference (with bias;
    # the bias is mathematically cancelled by training-mode BN, and bf16
    # matmul operands introduce ~1e-2-level deviations).
    feat_f, out_f = _reference_f32(x, raw)
    assert jnp.allclose(feat, feat_f, atol=0.1, rtol=0.1)
    assert jnp.allclose(out, out_f, atol=0.1, rtol=0.1)

    print("KERNEL_OK")
</pallas_src>

<mosaic_0001>
module attributes {stable_mosaic.version = 11 : i64} {
  func.func @_bottleneck_kernel(%arg0: i32, %arg1: memref<8x512xf32, #tpu.memory_space<vmem>>, %arg2: memref<512x128xbf16, #tpu.memory_space<vmem>>, %arg3: memref<128x128xbf16, #tpu.memory_space<vmem>>, %arg4: memref<128x128xbf16, #tpu.memory_space<vmem>>, %arg5: memref<128x512xbf16, #tpu.memory_space<vmem>>, %arg6: memref<2x896xf32, #tpu.memory_space<vmem>>, %arg7: memref<8x640xf32, #tpu.memory_space<vmem>>) attributes {dimension_semantics = [#tpu.dimension_semantics<arbitrary>], iteration_bounds = array<i64: 1>, scalar_prefetch = 0 : i64, scratch_operands = 0 : i64, tpu.core_type = #tpu.core_type<tc>, window_params = [{pipeline_mode = #tpu.pipeline_mode<synchronous>, transform_indices = @transform_0, window_bounds = array<i64: 8, 512>}, {pipeline_mode = #tpu.pipeline_mode<synchronous>, transform_indices = @transform_1, window_bounds = array<i64: 512, 128>}, {pipeline_mode = #tpu.pipeline_mode<synchronous>, transform_indices = @transform_2, window_bounds = array<i64: 128, 128>}, {pipeline_mode = #tpu.pipeline_mode<synchronous>, transform_indices = @transform_3, window_bounds = array<i64: 128, 128>}, {pipeline_mode = #tpu.pipeline_mode<synchronous>, transform_indices = @transform_4, window_bounds = array<i64: 128, 512>}, {pipeline_mode = #tpu.pipeline_mode<synchronous>, transform_indices = @transform_5, window_bounds = array<i64: 2, 896>}, {pipeline_mode = #tpu.pipeline_mode<synchronous>, transform_indices = @transform_6, window_bounds = array<i64: 8, 640>}]} {
    %c0 = arith.constant 0 : index
    %c0_0 = arith.constant 0 : index
    %0 = vector.load %arg1[%c0, %c0_0] : memref<8x512xf32, #tpu.memory_space<vmem>>, vector<8x512xf32>
    %c0_1 = arith.constant 0 : index
    %c0_2 = arith.constant 0 : index
    %1 = vector.load %arg6[%c0_1, %c0_2] : memref<2x896xf32, #tpu.memory_space<vmem>>, vector<1x128xf32>
    %c1 = arith.constant 1 : index
    %c0_3 = arith.constant 0 : index
    %2 = vector.load %arg6[%c1, %c0_3] : memref<2x896xf32, #tpu.memory_space<vmem>>, vector<1x128xf32>
    %3 = arith.truncf %0 : vector<8x512xf32> to vector<8x512xbf16>
    %c0_4 = arith.constant 0 : index
    %c0_5 = arith.constant 0 : index
    %4 = vector.load %arg2[%c0_4, %c0_5] : memref<512x128xbf16, #tpu.memory_space<vmem>>, vector<512x128xbf16>
    %cst = arith.constant dense<0.000000e+00> : vector<8x128xf32>
    %5 = tpu.matmul %3, %4, %cst {dimension_numbers = #tpu.dot_dimension_numbers<[1], [0], [0], [1], [0, 0, 1, 1], [], []>} : vector<8x512xbf16>, vector<512x128xbf16>, vector<8x128xf32> -> vector<8x128xf32>
    %cst_6 = arith.constant dense<0.000000e+00> : vector<128xf32>
    %6 = vector.multi_reduction <add>, %5, %cst_6 [0] : vector<8x128xf32> to vector<128xf32>
    %7 = vector.shape_cast %6 : vector<128xf32> to vector<1x128xf32>
    %cst_7 = arith.constant 1.250000e-01 : f32
    %8 = vector.broadcast %cst_7 : f32 to vector<1x128xf32>
    %9 = arith.mulf %7, %8 : vector<1x128xf32>
    %10 = vector.broadcast %9 : vector<1x128xf32> to vector<8x128xf32>
    %11 = arith.subf %5, %10 : vector<8x128xf32>
    %12 = arith.mulf %11, %11 : vector<8x128xf32>
    %cst_8 = arith.constant dense<0.000000e+00> : vector<128xf32>
    %13 = vector.multi_reduction <add>, %12, %cst_8 [0] : vector<8x128xf32> to vector<128xf32>
    %14 = vector.shape_cast %13 : vector<128xf32> to vector<1x128xf32>
    %cst_9 = arith.constant 1.250000e-01 : f32
    %15 = vector.broadcast %cst_9 : f32 to vector<1x128xf32>
    %16 = arith.mulf %14, %15 : vector<1x128xf32>
    %cst_10 = arith.constant 9.99999974E-6 : f32
    %17 = vector.broadcast %cst_10 : f32 to vector<1x128xf32>
    %18 = arith.addf %16, %17 : vector<1x128xf32>
    %19 = math.rsqrt %18 : vector<1x128xf32>
    %20 = arith.mulf %1, %19 : vector<1x128xf32>
    %21 = arith.mulf %9, %20 : vector<1x128xf32>
    %22 = arith.subf %2, %21 : vector<1x128xf32>
    %23 = vector.broadcast %20 : vector<1x128xf32> to vector<8x128xf32>
    %24 = arith.mulf %5, %23 : vector<8x128xf32>
    %25 = vector.broadcast %22 : vector<1x128xf32> to vector<8x128xf32>
    %26 = arith.addf %24, %25 : vector<8x128xf32>
    %cst_11 = arith.constant 0.000000e+00 : f32
    %27 = vector.broadcast %cst_11 : f32 to vector<8x128xf32>
    %28 = arith.maximumf %26, %27 : vector<8x128xf32>
    %c0_12 = arith.constant 0 : index
    %c128 = arith.constant 128 : index
    %29 = vector.load %arg6[%c0_12, %c128] : memref<2x896xf32, #tpu.memory_space<vmem>>, vector<1x128xf32>
    %c1_13 = arith.constant 1 : index
    %c128_14 = arith.constant 128 : index
    %30 = vector.load %arg6[%c1_13, %c128_14] : memref<2x896xf32, #tpu.memory_space<vmem>>, vector<1x128xf32>
    %31 = arith.truncf %28 : vector<8x128xf32> to vector<8x128xbf16>
    %c0_15 = arith.constant 0 : index
    %c0_16 = arith.constant 0 : index
    %32 = vector.load %arg3[%c0_15, %c0_16] : memref<128x128xbf16, #tpu.memory_space<vmem>>, vector<128x128xbf16>
    %cst_17 = arith.constant dense<0.000000e+00> : vector<8x128xf32>
    %33 = tpu.matmul %31, %32, %cst_17 {dimension_numbers = #tpu.dot_dimension_numbers<[1], [0], [0], [1], [0, 0, 1, 1], [], []>} : vector<8x128xbf16>, vector<128x128xbf16>, vector<8x128xf32> -> vector<8x128xf32>
    %cst_18 = arith.constant dense<0.000000e+00> : vector<128xf32>
    %34 = vector.multi_reduction <add>, %33, %cst_18 [0] : vector<8x128xf32> to vector<128xf32>
    %35 = vector.shape_cast %34 : vector<128xf32> to vector<1x128xf32>
    %cst_19 = arith.constant 1.250000e-01 : f32
    %36 = vector.broadcast %cst_19 : f32 to vector<1x128xf32>
    %37 = arith.mulf %35, %36 : vector<1x128xf32>
    %38 = vector.broadcast %37 : vector<1x128xf32> to vector<8x128xf32>
    %39 = arith.subf %33, %38 : vector<8x128xf32>
    %40 = arith.mulf %39, %39 : vector<8x128xf32>
    %cst_20 = arith.constant dense<0.000000e+00> : vector<128xf32>
    %41 = vector.multi_reduction <add>, %40, %cst_20 [0] : vector<8x128xf32> to vector<128xf32>
    %42 = vector.shape_cast %41 : vector<128xf32> to vector<1x128xf32>
    %cst_21 = arith.constant 1.250000e-01 : f32
    %43 = vector.broadcast %cst_21 : f32 to vector<1x128xf32>
    %44 = arith.mulf %42, %43 : vector<1x128xf32>
    %cst_22 = arith.constant 9.99999974E-6 : f32
    %45 = vector.broadcast %cst_22 : f32 to vector<1x128xf32>
    %46 = arith.addf %44, %45 : vector<1x128xf32>
    %47 = math.rsqrt %46 : vector<1x128xf32>
    %48 = arith.mulf %29, %47 : vector<1x128xf32>
    %49 = arith.mulf %37, %48 : vector<1x128xf32>
    %50 = arith.subf %30, %49 : vector<1x128xf32>
    %51 = vector.broadcast %48 : vector<1x128xf32> to vector<8x128xf32>
    %52 = arith.mulf %33, %51 : vector<8x128xf32>
    %53 = vector.broadcast %50 : vector<1x128xf32> to vector<8x128xf32>
    %54 = arith.addf %52, %53 : vector<8x128xf32>
    %c0_23 = arith.constant 0 : index
    %c256 = arith.constant 256 : index
    %55 = vector.load %arg6[%c0_23, %c256] : memref<2x896xf32, #tpu.memory_space<vmem>>, vector<1x128xf32>
    %c1_24 = arith.constant 1 : index
    %c256_25 = arith.constant 256 : index
    %56 = vector.load %arg6[%c1_24, %c256_25] : memref<2x896xf32, #tpu.memory_space<vmem>>, vector<1x128xf32>
    %57 = arith.truncf %54 : vector<8x128xf32> to vector<8x128xbf16>
    %c0_26 = arith.constant 0 : index
    %c0_27 = arith.constant 0 : index
    %58 = vector.load %arg4[%c0_26, %c0_27] : memref<128x128xbf16, #tpu.memory_space<vmem>>, vector<128x128xbf16>
    %cst_28 = arith.constant dense<0.000000e+00> : vector<8x128xf32>
    %59 = tpu.matmul %57, %58, %cst_28 {dimension_numbers = #tpu.dot_dimension_numbers<[1], [0], [0], [1], [0, 0, 1, 1], [], []>} : vector<8x128xbf16>, vector<128x128xbf16>, vector<8x128xf32> -> vector<8x128xf32>
    %cst_29 = arith.constant dense<0.000000e+00> : vector<128xf32>
    %60 = vector.multi_reduction <add>, %59, %cst_29 [0] : vector<8x128xf32> to vector<128xf32>
    %61 = vector.shape_cast %60 : vector<128xf32> to vector<1x128xf32>
    %cst_30 = arith.constant 1.250000e-01 : f32
    %62 = vector.broadcast %cst_30 : f32 to vector<1x128xf32>
    %63 = arith.mulf %61, %62 : vector<1x128xf32>
    %64 = vector.broadcast %63 : vector<1x128xf32> to vector<8x128xf32>
    %65 = arith.subf %59, %64 : vector<8x128xf32>
    %66 = arith.mulf %65, %65 : vector<8x128xf32>
    %cst_31 = arith.constant dense<0.000000e+00> : vector<128xf32>
    %67 = vector.multi_reduction <add>, %66, %cst_31 [0] : vector<8x128xf32> to vector<128xf32>
    %68 = vector.shape_cast %67 : vector<128xf32> to vector<1x128xf32>
    %cst_32 = arith.constant 1.250000e-01 : f32
    %69 = vector.broadcast %cst_32 : f32 to vector<1x128xf32>
    %70 = arith.mulf %68, %69 : vector<1x128xf32>
    %cst_33 = arith.constant 9.99999974E-6 : f32
    %71 = vector.broadcast %cst_33 : f32 to vector<1x128xf32>
    %72 = arith.addf %70, %71 : vector<1x128xf32>
    %73 = math.rsqrt %72 : vector<1x128xf32>
    %74 = arith.mulf %55, %73 : vector<1x128xf32>
    %75 = arith.mulf %63, %74 : vector<1x128xf32>
    %76 = arith.subf %56, %75 : vector<1x128xf32>
    %77 = vector.broadcast %74 : vector<1x128xf32> to vector<8x128xf32>
    %78 = arith.mulf %59, %77 : vector<8x128xf32>
    %79 = vector.broadcast %76 : vector<1x128xf32> to vector<8x128xf32>
    %80 = arith.addf %78, %79 : vector<8x128xf32>
    %cst_34 = arith.constant 0.000000e+00 : f32
    %81 = vector.broadcast %cst_34 : f32 to vector<8x128xf32>
    %82 = arith.maximumf %80, %81 : vector<8x128xf32>
    %c0_35 = arith.constant 0 : index
    %c384 = arith.constant 384 : index
    %83 = vector.load %arg6[%c0_35, %c384] : memref<2x896xf32, #tpu.memory_space<vmem>>, vector<1x512xf32>
    %c1_36 = arith.constant 1 : index
    %c384_37 = arith.constant 384 : index
    %84 = vector.load %arg6[%c1_36, %c384_37] : memref<2x896xf32, #tpu.memory_space<vmem>>, vector<1x512xf32>
    %85 = arith.truncf %82 : vector<8x128xf32> to vector<8x128xbf16>
    %c0_38 = arith.constant 0 : index
    %c0_39 = arith.constant 0 : index
    %86 = vector.load %arg5[%c0_38, %c0_39] : memref<128x512xbf16, #tpu.memory_space<vmem>>, vector<128x512xbf16>
    %cst_40 = arith.constant dense<0.000000e+00> : vector<8x512xf32>
    %87 = tpu.matmul %85, %86, %cst_40 {dimension_numbers = #tpu.dot_dimension_numbers<[1], [0], [0], [1], [0, 0, 1, 1], [], []>} : vector<8x128xbf16>, vector<128x512xbf16>, vector<8x512xf32> -> vector<8x512xf32>
    %cst_41 = arith.constant dense<0.000000e+00> : vector<512xf32>
    %88 = vector.multi_reduction <add>, %87, %cst_41 [0] : vector<8x512xf32> to vector<512xf32>
    %89 = vector.shape_cast %88 : vector<512xf32> to vector<1x512xf32>
    %cst_42 = arith.constant 1.250000e-01 : f32
    %90 = vector.broadcast %cst_42 : f32 to vector<1x512xf32>
    %91 = arith.mulf %89, %90 : vector<1x512xf32>
    %92 = vector.broadcast %91 : vector<1x512xf32> to vector<8x512xf32>
    %93 = arith.subf %87, %92 : vector<8x512xf32>
    %94 = arith.mulf %93, %93 : vector<8x512xf32>
    %cst_43 = arith.constant dense<0.000000e+00> : vector<512xf32>
    %95 = vector.multi_reduction <add>, %94, %cst_43 [0] : vector<8x512xf32> to vector<512xf32>
    %96 = vector.shape_cast %95 : vector<512xf32> to vector<1x512xf32>
    %cst_44 = arith.constant 1.250000e-01 : f32
    %97 = vector.broadcast %cst_44 : f32 to vector<1x512xf32>
    %98 = arith.mulf %96, %97 : vector<1x512xf32>
    %cst_45 = arith.constant 9.99999974E-6 : f32
    %99 = vector.broadcast %cst_45 : f32 to vector<1x512xf32>
    %100 = arith.addf %98, %99 : vector<1x512xf32>
    %101 = math.rsqrt %100 : vector<1x512xf32>
    %102 = arith.mulf %83, %101 : vector<1x512xf32>
    %103 = arith.mulf %91, %102 : vector<1x512xf32>
    %104 = arith.subf %84, %103 : vector<1x512xf32>
    %105 = vector.broadcast %102 : vector<1x512xf32> to vector<8x512xf32>
    %106 = arith.mulf %87, %105 : vector<8x512xf32>
    %107 = vector.broadcast %104 : vector<1x512xf32> to vector<8x512xf32>
    %108 = arith.addf %106, %107 : vector<8x512xf32>
    %c0_46 = arith.constant 0 : index
    %c0_47 = arith.constant 0 : index
    %109 = vector.load %arg7[%c0_46, %c0_47] : memref<8x640xf32, #tpu.memory_space<vmem>>, vector<8x128xf32>
    tpu.vector_store %arg7[%c0_46, %c0_47], %54 {strides = array<i32>} : memref<8x640xf32, #tpu.memory_space<vmem>>, vector<8x128xf32>,
    %c0_48 = arith.constant 0 : index
    %c128_49 = arith.constant 128 : index
    %110 = vector.load %arg7[%c0_48, %c128_49] : memref<8x640xf32, #tpu.memory_space<vmem>>, vector<8x512xf32>
    tpu.vector_store %arg7[%c0_48, %c128_49], %108 {strides = array<i32>} : memref<8x640xf32, #tpu.memory_space<vmem>>, vector<8x512xf32>,
    return
  }
  func.func @transform_0(%arg0: i32) -> (i32, i32) {
    %c0_i32 = arith.constant 0 : i32
    %c0_i32_0 = arith.constant 0 : i32
    %c0_i32_1 = arith.constant 0 : i32
    return %c0_i32, %c0_i32_0 : i32, i32
  }
  func.func @transform_1(%arg0: i32) -> (i32, i32) {
    %c0_i32 = arith.constant 0 : i32
    %c0_i32_0 = arith.constant 0 : i32
    %c0_i32_1 = arith.constant 0 : i32
    return %c0_i32, %c0_i32_0 : i32, i32
  }
  func.func @transform_2(%arg0: i32) -> (i32, i32) {
    %c0_i32 = arith.constant 0 : i32
    %c0_i32_0 = arith.constant 0 : i32
    %c0_i32_1 = arith.constant 0 : i32
    return %c0_i32, %c0_i32_0 : i32, i32
  }
  func.func @transform_3(%arg0: i32) -> (i32, i32) {
    %c0_i32 = arith.constant 0 : i32
    %c0_i32_0 = arith.constant 0 : i32
    %c0_i32_1 = arith.constant 0 : i32
    return %c0_i32, %c0_i32_0 : i32, i32
  }
  func.func @transform_4(%arg0: i32) -> (i32, i32) {
    %c0_i32 = arith.constant 0 : i32
    %c0_i32_0 = arith.constant 0 : i32
    %c0_i32_1 = arith.constant 0 : i32
    return %c0_i32, %c0_i32_0 : i32, i32
  }
  func.func @transform_5(%arg0: i32) -> (i32, i32) {
    %c0_i32 = arith.constant 0 : i32
    %c0_i32_0 = arith.constant 0 : i32
    %c0_i32_1 = arith.constant 0 : i32
    return %c0_i32, %c0_i32_0 : i32, i32
  }
  func.func @transform_6(%arg0: i32) -> (i32, i32) {
    %c0_i32 = arith.constant 0 : i32
    %c0_i32_0 = arith.constant 0 : i32
    %c0_i32_1 = arith.constant 0 : i32
    return %c0_i32, %c0_i32_0 : i32, i32
  }
}

</mosaic_0001>

<llo_original>
// kernel: bottleneck_forward.1
$region0: #{bottleneck_forward.1}
  #allocation0 [shape = 'u32[]', space=smem, size = 0x4, offset = 0x4, fixed_abs, tag = 'smem constant byte address 0x4 - core index']
  #allocation1 [shape = 'u32[144,128]{1,0:T(1,128)}', space=vmem, size = 0x12000, scoped, tag = 'internal scratch']
  %s0 = inlined_call_operand.hbm [shape: f32[8,512], index: 0, kind: input, shape index: {}]
  %s1 = inlined_call_operand.hbm [shape: bf16[512,128], index: 1, kind: input, shape index: {}]
  %s2 = inlined_call_operand.hbm [shape: bf16[128,128], index: 2, kind: input, shape index: {}]
  %s3 = inlined_call_operand.hbm [shape: bf16[128,128], index: 3, kind: input, shape index: {}]
  %s4 = inlined_call_operand.hbm [shape: bf16[128,512], index: 4, kind: input, shape index: {}]
  %s5 = inlined_call_operand.hbm [shape: f32[2,896], index: 5, kind: input, shape index: {}]
  %s6 = inlined_call_operand.vmem [shape: f32[8,640], index: 6, kind: output, shape index: {}]
  %s7 = sld [smem:[#allocation0]]
  $region58: #{bottleneck_forward.1} parent=0
    _
  %s9 = ssub.s32 1, %s7
  %s10 = scalar_select 0, %s9, %s7
  $region1: #{bottleneck_forward.1} parent=0
    #allocation2 [shape = 'u8[16384]{0}', space=vmem, size = 0x4000, scoped, tag = 'input window, operand 0, single buffered']
    #allocation3 [shape = 's32[1]{0}', space=sflag, size = 0x4, scoped, tag = 'scoped memory for bottleneck_forward.1']
    #allocation4 [shape = 'u8[131072]{0}', space=vmem, size = 0x20000, scoped, tag = 'input window, operand 1, single buffered']
    #allocation5 [shape = 's32[1]{0}', space=sflag, size = 0x4, scoped, tag = 'scoped memory for bottleneck_forward.1']
    #allocation6 [shape = 'u8[32768]{0}', space=vmem, size = 0x8000, scoped, tag = 'input window, operand 2, single buffered']
    #allocation7 [shape = 'u8[32768]{0}', space=vmem, size = 0x8000, scoped, tag = 'input window, operand 3, single buffered']
    #allocation8 [shape = 's32[1]{0}', space=sflag, size = 0x4, scoped, tag = 'scoped memory for bottleneck_forward.1']
    #allocation9 [shape = 'u8[131072]{0}', space=vmem, size = 0x20000, scoped, tag = 'input window, operand 4, single buffered']
    #allocation10 [shape = 'u8[7168]{0}', space=vmem, size = 0x1c00, scoped, tag = 'input window, operand 5, single buffered']
    #allocation11 [shape = 's32[1]{0}', space=sflag, size = 0x4, scoped, tag = 'scoped memory for bottleneck_forward.1']
    %11 = vsyncpa [#allocation3], 0
    %12 = vsyncpa [#allocation5], 0
    %13 = vsyncpa [#allocation8], 0
    %14 = vsyncpa [#allocation11], 0
    // Predicated region
    $region2: #{bottleneck_forward.1} parent=1 // pred_check
      _
    $region3: #{bottleneck_forward.1} parent=1 // pred_check_branch
      %16 = sbr.rel (0) target = $region5
    $region4: #{bottleneck_forward.1} parent=1 // pred_region
      %s18 = ssub.s32 512, 512
      %19 = vsyncadd [#allocation3], %s18
      %s21 = sshll.u32 [#allocation2], 4
      %s22 = int_to_ptr.vmem [resolvable:$true] %s21
      %24 = dma.hbm_to_vmem [thread:$0]  %s0, 512, %s22, [#allocation3]
    $region5: #{bottleneck_forward.1} parent=1 // pred_fallthru
      _
    // Predicated region
    $region6: #{bottleneck_forward.1} parent=1 // pred_check
      _
    $region7: #{bottleneck_forward.1} parent=1 // pred_check_branch
      %26 = sbr.rel (0) target = $region9
    $region8: #{bottleneck_forward.1} parent=1 // pred_region
      %s28 = ssub.s32 4096, 4096
      %29 = vsyncadd [#allocation5], %s28
      %s30 = sshll.u32 [#allocation4], 4
      %s31 = int_to_ptr.vmem [resolvable:$true] %s30
      %36 = dma.hbm_to_vmem [thread:$0]  %s1, 4096, %s31, [#allocation5], 64, 64, 4
    $region9: #{bottleneck_forward.1} parent=1 // pred_fallthru
      _
    // Predicated region
    $region10: #{bottleneck_forward.1} parent=1 // pred_check
      _
    $region11: #{bottleneck_forward.1} parent=1 // pred_check_branch
      %38 = sbr.rel (0) target = $region13
    $region12: #{bottleneck_forward.1} parent=1 // pred_region
      %s40 = ssub.s32 1024, 1024
      %41 = vsyncadd [#allocation5], %s40
      %s42 = sshll.u32 [#allocation6], 4
      %s43 = int_to_ptr.vmem [resolvable:$true] %s42
      %48 = dma.hbm_to_vmem [thread:$0]  %s2, 1024, %s43, [#allocation5], 64, 64, 4
    $region13: #{bottleneck_forward.1} parent=1 // pred_fallthru
      _
    // Predicated region
    $region14: #{bottleneck_forward.1} parent=1 // pred_check
      _
    $region15: #{bottleneck_forward.1} parent=1 // pred_check_branch
      %50 = sbr.rel (0) target = $region17
    $region16: #{bottleneck_forward.1} parent=1 // pred_region
      %s52 = ssub.s32 1024, 1024
      %53 = vsyncadd [#allocation8], %s52
      %s54 = sshll.u32 [#allocation7], 4
      %s55 = int_to_ptr.vmem [resolvable:$true] %s54
      %60 = dma.hbm_to_vmem [thread:$0]  %s3, 1024, %s55, [#allocation8], 64, 64, 4
    $region17: #{bottleneck_forward.1} parent=1 // pred_fallthru
      _
    // Predicated region
    $region18: #{bottleneck_forward.1} parent=1 // pred_check
      _
    $region19: #{bottleneck_forward.1} parent=1 // pred_check_branch
      %62 = sbr.rel (0) target = $region21
    $region20: #{bottleneck_forward.1} parent=1 // pred_region
      %s64 = ssub.s32 4096, 4096
      %65 = vsyncadd [#allocation8], %s64
      %s66 = sshll.u32 [#allocation9], 4
      %s67 = int_to_ptr.vmem [resolvable:$true] %s66
      %72 = dma.hbm_to_vmem [thread:$0]  %s4, 4096, %s67, [#allocation8], 256, 256, 16
    $region21: #{bottleneck_forward.1} parent=1 // pred_fallthru
      _
    // Predicated region
    $region22: #{bottleneck_forward.1} parent=1 // pred_check
      _
    $region23: #{bottleneck_forward.1} parent=1 // pred_check_branch
      %74 = sbr.rel (0) target = $region25
    $region24: #{bottleneck_forward.1} parent=1 // pred_region
      %s76 = ssub.s32 224, 224
      %77 = vsyncadd [#allocation11], %s76
      %s79 = sshll.u32 [#allocation10], 4
      %s80 = int_to_ptr.vmem [resolvable:$true] %s79
      %82 = dma.hbm_to_vmem [thread:$0]  %s5, 224, %s80, [#allocation11]
    $region25: #{bottleneck_forward.1} parent=1 // pred_fallthru
      _
    // Predicated region
    $region26: #{bottleneck_forward.1} parent=1 // pred_check
      _
    $region27: #{bottleneck_forward.1} parent=1 // pred_check_branch
      %84 = sbr.rel (0) target = $region29
    $region28: #{bottleneck_forward.1} parent=1 // pred_region
      %85 = dma.done [#allocation3], 512
    $region29: #{bottleneck_forward.1} parent=1 // pred_fallthru
      _
    // Predicated region
    $region30: #{bottleneck_forward.1} parent=1 // pred_check
      _
    $region31: #{bottleneck_forward.1} parent=1 // pred_check_branch
      %87 = sbr.rel (0) target = $region33
    $region32: #{bottleneck_forward.1} parent=1 // pred_region
      %88 = dma.done [#allocation5], 4096
    $region33: #{bottleneck_forward.1} parent=1 // pred_fallthru
      _
    // Predicated region
    $region34: #{bottleneck_forward.1} parent=1 // pred_check
      _
    $region35: #{bottleneck_forward.1} parent=1 // pred_check_branch
      %90 = sbr.rel (0) target = $region37
    $region36: #{bottleneck_forward.1} parent=1 // pred_region
      %91 = dma.done [#allocation5], 1024
    $region37: #{bottleneck_forward.1} parent=1 // pred_fallthru
      _
    // Predicated region
    $region38: #{bottleneck_forward.1} parent=1 // pred_check
      _
    $region39: #{bottleneck_forward.1} parent=1 // pred_check_branch
      %93 = sbr.rel (0) target = $region41
    $region40: #{bottleneck_forward.1} parent=1 // pred_region
      %94 = dma.done [#allocation8], 1024
    $region41: #{bottleneck_forward.1} parent=1 // pred_fallthru
      _
    // Predicated region
    $region42: #{bottleneck_forward.1} parent=1 // pred_check
      _
    $region43: #{bottleneck_forward.1} parent=1 // pred_check_branch
      %96 = sbr.rel (0) target = $region45
    $region44: #{bottleneck_forward.1} parent=1 // pred_region
      %97 = dma.done [#allocation8], 4096
    $region45: #{bottleneck_forward.1} parent=1 // pred_fallthru
      _
    // Predicated region
    $region46: #{bottleneck_forward.1} parent=1 // pred_check
      _
    $region47: #{bottleneck_forward.1} parent=1 // pred_check_branch
      %99 = sbr.rel (0) target = $region49
    $region48: #{bottleneck_forward.1} parent=1 // pred_region
      %100 = dma.done [#allocation11], 224
    $region49: #{bottleneck_forward.1} parent=1 // pred_fallthru
      _
    %v102 = vld [vmem:[#allocation2] sm:$0xff]
    %v103 = vld [vmem:[#allocation2 + $0x8] sm:$0xff]
    %v104 = vld [vmem:[#allocation2 + $0x10] sm:$0xff]
    %v105 = vld [vmem:[#allocation2 + $0x18] sm:$0xff]
    %v106 = vld [vmem:[#allocation10] sm:$0x1]
    %v107 = vld [vmem:[#allocation10 + $0x1] sm:$0x1]
    %v108 = vpack.c.bf16 %v102, %v102
    %v109 = vpack.c.bf16 %v103, %v103
    %v110 = vpack.c.bf16 %v104, %v104
    %v111 = vpack.c.bf16 %v105, %v105
    %v112 = vld [vmem:[#allocation4] sm:$0xf]
    %v113 = vld [vmem:[#allocation4 + $0x4] sm:$0xf]
    %v114 = vld [vmem:[#allocation4 + $0x8] sm:$0xf]
    %v115 = vld [vmem:[#allocation4 + $0xc] sm:$0xf]
    %v116 = vld [vmem:[#allocation4 + $0x10] sm:$0xf]
    %v117 = vld [vmem:[#allocation4 + $0x14] sm:$0xf]
    %v118 = vld [vmem:[#allocation4 + $0x18] sm:$0xf]
    %v119 = vld [vmem:[#allocation4 + $0x1c] sm:$0xf]
    %v120 = vld [vmem:[#allocation4 + $0x20] sm:$0xf]
    %v121 = vld [vmem:[#allocation4 + $0x24] sm:$0xf]
    %v122 = vld [vmem:[#allocation4 + $0x28] sm:$0xf]
    %v123 = vld [vmem:[#allocation4 + $0x2c] sm:$0xf]
    %v124 = vld [vmem:[#allocation4 + $0x30] sm:$0xf]
    %v125 = vld [vmem:[#allocation4 + $0x34] sm:$0xf]
    %v126 = vld [vmem:[#allocation4 + $0x38] sm:$0xf]
    %v127 = vld [vmem:[#allocation4 + $0x3c] sm:$0xf]
    %v128 = vld [vmem:[#allocation4 + $0x40] sm:$0xf]
    %v129 = vld [vmem:[#allocation4 + $0x44] sm:$0xf]
    %v130 = vld [vmem:[#allocation4 + $0x48] sm:$0xf]
    %v131 = vld [vmem:[#allocation4 + $0x4c] sm:$0xf]
    %v132 = vld [vmem:[#allocation4 + $0x50] sm:$0xf]
    %v133 = vld [vmem:[#allocation4 + $0x54] sm:$0xf]
    %v134 = vld [vmem:[#allocation4 + $0x58] sm:$0xf]
    %v135 = vld [vmem:[#allocation4 + $0x5c] sm:$0xf]
    %v136 = vld [vmem:[#allocation4 + $0x60] sm:$0xf]
    %v137 = vld [vmem:[#allocation4 + $0x64] sm:$0xf]
    %v138 = vld [vmem:[#allocation4 + $0x68] sm:$0xf]
    %v139 = vld [vmem:[#allocation4 + $0x6c] sm:$0xf]
    %v140 = vld [vmem:[#allocation4 + $0x70] sm:$0xf]
    %v141 = vld [vmem:[#allocation4 + $0x74] sm:$0xf]
    %v142 = vld [vmem:[#allocation4 + $0x78] sm:$0xf]
    %v143 = vld [vmem:[#allocation4 + $0x7c] sm:$0xf]
    %v144 = vld [vmem:[#allocation4 + $0x80] sm:$0xf]
    %v145 = vld [vmem:[#allocation4 + $0x84] sm:$0xf]
    %v146 = vld [vmem:[#allocation4 + $0x88] sm:$0xf]
    %v147 = vld [vmem:[#allocation4 + $0x8c] sm:$0xf]
    %v148 = vld [vmem:[#allocation4 + $0x90] sm:$0xf]
    %v149 = vld [vmem:[#allocation4 + $0x94] sm:$0xf]
    %v150 = vld [vmem:[#allocation4 + $0x98] sm:$0xf]
    %v151 = vld [vmem:[#allocation4 + $0x9c] sm:$0xf]
    %v152 = vld [vmem:[#allocation4 + $0xa0] sm:$0xf]
    %v153 = vld [vmem:[#allocation4 + $0xa4] sm:$0xf]
    %v154 = vld [vmem:[#allocation4 + $0xa8] sm:$0xf]
    %v155 = vld [vmem:[#allocation4 + $0xac] sm:$0xf]
    %v156 = vld [vmem:[#allocation4 + $0xb0] sm:$0xf]
    %v157 = vld [vmem:[#allocation4 + $0xb4] sm:$0xf]
    %v158 = vld [vmem:[#allocation4 + $0xb8] sm:$0xf]
    %v159 = vld [vmem:[#allocation4 + $0xbc] sm:$0xf]
    %v160 = vld [vmem:[#allocation4 + $0xc0] sm:$0xf]
    %v161 = vld [vmem:[#allocation4 + $0xc4] sm:$0xf]
    %v162 = vld [vmem:[#allocation4 + $0xc8] sm:$0xf]
    %v163 = vld [vmem:[#allocation4 + $0xcc] sm:$0xf]
    %v164 = vld [vmem:[#allocation4 + $0xd0] sm:$0xf]
    %v165 = vld [vmem:[#allocation4 + $0xd4] sm:$0xf]
    %v166 = vld [vmem:[#allocation4 + $0xd8] sm:$0xf]
    %v167 = vld [vmem:[#allocation4 + $0xdc] sm:$0xf]
    %v168 = vld [vmem:[#allocation4 + $0xe0] sm:$0xf]
    %v169 = vld [vmem:[#allocation4 + $0xe4] sm:$0xf]
    %v170 = vld [vmem:[#allocation4 + $0xe8] sm:$0xf]
    %v171 = vld [vmem:[#allocation4 + $0xec] sm:$0xf]
    %v172 = vld [vmem:[#allocation4 + $0xf0] sm:$0xf]
    %v173 = vld [vmem:[#allocation4 + $0xf4] sm:$0xf]
    %v174 = vld [vmem:[#allocation4 + $0xf8] sm:$0xf]
    %v175 = vld [vmem:[#allocation4 + $0xfc] sm:$0xf]
    %v240 = vunpack.c.l.b16 %v112
    %v241 = vunpack.c.l.b16 %v113
    %v242 = vunpack.c.l.b16 %v114
    %v243 = vunpack.c.l.b16 %v115
    %v244 = vunpack.c.l.b16 %v116
    %v245 = vunpack.c.l.b16 %v117
    %v246 = vunpack.c.l.b16 %v118
    %v247 = vunpack.c.l.b16 %v119
    %v248 = vunpack.c.l.b16 %v120
    %v249 = vunpack.c.l.b16 %v121
    %v250 = vunpack.c.l.b16 %v122
    %v251 = vunpack.c.l.b16 %v123
    %v252 = vunpack.c.l.b16 %v124
    %v253 = vunpack.c.l.b16 %v125
    %v254 = vunpack.c.l.b16 %v126
    %v255 = vunpack.c.l.b16 %v127
    %v256 = vunpack.c.l.b16 %v128
    %v257 = vunpack.c.l.b16 %v129
    %v258 = vunpack.c.l.b16 %v130
    %v259 = vunpack.c.l.b16 %v131
    %v260 = vunpack.c.l.b16 %v132
    %v261 = vunpack.c.l.b16 %v133
    %v262 = vunpack.c.l.b16 %v134
    %v263 = vunpack.c.l.b16 %v135
    %v264 = vunpack.c.l.b16 %v136
    %v265 = vunpack.c.l.b16 %v137
    %v266 = vunpack.c.l.b16 %v138
    %v267 = vunpack.c.l.b16 %v139
    %v268 = vunpack.c.l.b16 %v140
    %v269 = vunpack.c.l.b16 %v141
    %v270 = vunpack.c.l.b16 %v142
    %v271 = vunpack.c.l.b16 %v143
    %v272 = vunpack.c.l.b16 %v144
    %v273 = vunpack.c.l.b16 %v145
    %v274 = vunpack.c.l.b16 %v146
    %v275 = vunpack.c.l.b16 %v147
    %v276 = vunpack.c.l.b16 %v148
    %v277 = vunpack.c.l.b16 %v149
    %v278 = vunpack.c.l.b16 %v150
    %v279 = vunpack.c.l.b16 %v151
    %v280 = vunpack.c.l.b16 %v152
    %v281 = vunpack.c.l.b16 %v153
    %v282 = vunpack.c.l.b16 %v154
    %v283 = vunpack.c.l.b16 %v155
    %v284 = vunpack.c.l.b16 %v156
    %v285 = vunpack.c.l.b16 %v157
    %v286 = vunpack.c.l.b16 %v158
    %v287 = vunpack.c.l.b16 %v159
    %v288 = vunpack.c.l.b16 %v160
    %v289 = vunpack.c.l.b16 %v161
    %v290 = vunpack.c.l.b16 %v162
    %v291 = vunpack.c.l.b16 %v163
    %v292 = vunpack.c.l.b16 %v164
    %v293 = vunpack.c.l.b16 %v165
    %v294 = vunpack.c.l.b16 %v166
    %v295 = vunpack.c.l.b16 %v167
    %v296 = vunpack.c.l.b16 %v168
    %v297 = vunpack.c.l.b16 %v169
    %v298 = vunpack.c.l.b16 %v170
    %v299 = vunpack.c.l.b16 %v171
    %v300 = vunpack.c.l.b16 %v172
    %v301 = vunpack.c.l.b16 %v173
    %v302 = vunpack.c.l.b16 %v174
    %v303 = vunpack.c.l.b16 %v175
    %v304 = vpack.c.b16 %v241, %v240
    %v305 = vpack.c.b16 %v243, %v242
    %v306 = vpack.c.b16 %v245, %v244
    %v307 = vpack.c.b16 %v247, %v246
    %v308 = vpack.c.b16 %v249, %v248
    %v309 = vpack.c.b16 %v251, %v250
    %v310 = vpack.c.b16 %v253, %v252
    %v311 = vpack.c.b16 %v255, %v254
    %v312 = vpack.c.b16 %v257, %v256
    %v313 = vpack.c.b16 %v259, %v258
    %v314 = vpack.c.b16 %v261, %v260
    %v315 = vpack.c.b16 %v263, %v262
    %v316 = vpack.c.b16 %v265, %v264
    %v317 = vpack.c.b16 %v267, %v266
    %v318 = vpack.c.b16 %v269, %v268
    %v319 = vpack.c.b16 %v271, %v270
    %v320 = vpack.c.b16 %v273, %v272
    %v321 = vpack.c.b16 %v275, %v274
    %v322 = vpack.c.b16 %v277, %v276
    %v323 = vpack.c.b16 %v279, %v278
    %v324 = vpack.c.b16 %v281, %v280
    %v325 = vpack.c.b16 %v283, %v282
    %v326 = vpack.c.b16 %v285, %v284
    %v327 = vpack.c.b16 %v287, %v286
    %v328 = vpack.c.b16 %v289, %v288
    %v329 = vpack.c.b16 %v291, %v290
    %v330 = vpack.c.b16 %v293, %v292
    %v331 = vpack.c.b16 %v295, %v294
    %v332 = vpack.c.b16 %v297, %v296
    %v333 = vpack.c.b16 %v299, %v298
    %v334 = vpack.c.b16 %v301, %v300
    %v335 = vpack.c.b16 %v303, %v302
    %368 = vmatprep.subr.bf16.mxu0 0
    %369 = vmatpush1.bf16.msra.mxu0 %v304
    %370 = vmatprep.subr.bf16.mxu0 0
    %371 = vmatpush1.bf16.msra.mxu0 %v305
    %372 = vmatprep.subr.bf16.mxu0 0
    %373 = vmatpush1.bf16.msra.mxu0 %v306
    %374 = vmatprep.subr.bf16.mxu0 0
    %375 = vmatpush1.bf16.msra.mxu0 %v307
    %376 = vmatprep.subr.bf16.mxu0 0
    %377 = vmatpush1.bf16.msra.mxu0 %v308
    %378 = vmatprep.subr.bf16.mxu0 0
    %379 = vmatpush1.bf16.msra.mxu0 %v309
    %380 = vmatprep.subr.bf16.mxu0 0
    %381 = vmatpush1.bf16.msra.mxu0 %v310
    %382 = vmatprep.subr.bf16.mxu0 0
    %383 = vmatpush1.bf16.msra.mxu0 %v311
    %384 = vmatprep.subr.bf16.mxu0 0
    %385 = vmatpush1.bf16.msra.mxu0 %v312
    %386 = vmatprep.subr.bf16.mxu0 0
    %387 = vmatpush1.bf16.msra.mxu0 %v313
    %388 = vmatprep.subr.bf16.mxu0 0
    %389 = vmatpush1.bf16.msra.mxu0 %v314
    %390 = vmatprep.subr.bf16.mxu0 0
    %391 = vmatpush1.bf16.msra.mxu0 %v315
    %392 = vmatprep.subr.bf16.mxu0 0
    %393 = vmatpush1.bf16.msra.mxu0 %v316
    %394 = vmatprep.subr.bf16.mxu0 0
    %395 = vmatpush1.bf16.msra.mxu0 %v317
    %396 = vmatprep.subr.bf16.mxu0 0
    %397 = vmatpush1.bf16.msra.mxu0 %v318
    %398 = vmatprep.subr.bf16.mxu0 0
    %399 = vmatpush1.bf16.msra.mxu0 %v319
    %400 = vmatprep.mubr.bf16.mxu0 %v109
    %401 = vmatmul.mubr.bf16.gmra.mrb[0].mxu0 %v108
    %v402 = vpop.f32.mrb[0].mxu0
    %v403 = vadd.f32 0.0, %v402
    %v404 = vpop.f32.mrb[0].mxu0
    %v405 = vpop.f32.mrb[0].mxu0
    %v406 = vpop.f32.mrb[0].mxu0
    %407 = vdwg.mxu0
    %408 = vmatprep.subr.bf16.mxu0 0
    %409 = vmatpush1.bf16.msra.mxu0 %v320
    %410 = vmatprep.subr.bf16.mxu0 0
    %411 = vmatpush1.bf16.msra.mxu0 %v321
    %412 = vmatprep.subr.bf16.mxu0 0
    %413 = vmatpush1.bf16.msra.mxu0 %v322
    %414 = vmatprep.subr.bf16.mxu0 0
    %415 = vmatpush1.bf16.msra.mxu0 %v323
    %416 = vmatprep.subr.bf16.mxu0 0
    %417 = vmatpush1.bf16.msra.mxu0 %v324
    %418 = vmatprep.subr.bf16.mxu0 0
    %419 = vmatpush1.bf16.msra.mxu0 %v325
    %420 = vmatprep.subr.bf16.mxu0 0
    %421 = vmatpush1.bf16.msra.mxu0 %v326
    %422 = vmatprep.subr.bf16.mxu0 0
    %423 = vmatpush1.bf16.msra.mxu0 %v327
    %424 = vmatprep.subr.bf16.mxu0 0
    %425 = vmatpush1.bf16.msra.mxu0 %v328
    %426 = vmatprep.subr.bf16.mxu0 0
    %427 = vmatpush1.bf16.msra.mxu0 %v329
    %428 = vmatprep.subr.bf16.mxu0 0
    %429 = vmatpush1.bf16.msra.mxu0 %v330
    %430 = vmatprep.subr.bf16.mxu0 0
    %431 = vmatpush1.bf16.msra.mxu0 %v331
    %432 = vmatprep.subr.bf16.mxu0 0
    %433 = vmatpush1.bf16.msra.mxu0 %v332
    %434 = vmatprep.subr.bf16.mxu0 0
    %435 = vmatpush1.bf16.msra.mxu0 %v333
    %436 = vmatprep.subr.bf16.mxu0 0
    %437 = vmatpush1.bf16.msra.mxu0 %v334
    %438 = vmatprep.subr.bf16.mxu0 0
    %439 = vmatpush1.bf16.msra.mxu0 %v335
    %440 = vmatprep.mubr.bf16.mxu0 %v111
    %441 = vmatmul.mubr.bf16.gmra.mrb[0].mxu0 %v110
    %v442 = vpop.f32.mrb[0].mxu0
    %v443 = vadd.f32 %v403, %v442
    %v444 = vpop.f32.mrb[0].mxu0
    %v445 = vpop.f32.mrb[0].mxu0
    %v446 = vpop.f32.mrb[0].mxu0
    %447 = vdwg.mxu0
    %v448 = vrot.slane %v443, 4
    %v449 = vadd.f32 %v443, %v448
    %v450 = vrot.slane %v449, 2
    %v451 = vadd.f32 %v449, %v450
    %v452 = vrot.slane %v451, 1
    %v453 = vadd.f32 %v451, %v452
    %v454 = vmul.f32 %v453, 0.125
    %v455 = vsub.f32 %v443, %v454
    %v456 = vmul.f32 %v455, %v455
    %v457 = vrot.slane %v456, 4
    %v458 = vadd.f32 %v456, %v457
    %v459 = vrot.slane %v458, 2
    %v460 = vadd.f32 %v458, %v459
    %v461 = vrot.slane %v460, 1
    %v462 = vadd.f32 %v460, %v461
    %v463 = vmul.f32 %v462, 0.125
    %v464 = vadd.f32 %v463, 1e-05
    %v465 = vrsqrt.pop %v464
    %v466 = vmul.f32 %v106, %v465
    %v467 = vmul.f32 %v454, %v466
    %v468 = vsub.f32 %v107, %v467
    %v469 = vlaneseq
    %v470 = vshrl.u32 %v469, 7
    %v471 = vsub.s32 0, %v470
    %v472 = vrot.slane %v466, %v471
    %v473 = vmul.f32 %v443, %v472
    %v474 = vlaneseq
    %v475 = vshrl.u32 %v474, 7
    %v476 = vsub.s32 0, %v475
    %v477 = vrot.slane %v468, %v476
    %v478 = vadd.f32 %v473, %v477
    %v479 = vmax.f32 %v478, 0.0
    %v480 = vld [vmem:[#allocation10 + $0x2] sm:$0x1]
    %v481 = vld [vmem:[#allocation10 + $0x3] sm:$0x1]
    %v482 = vpack.c.bf16 %v479, %v479
    %v483 = vld [vmem:[#allocation6] sm:$0xf]
    %v484 = vld [vmem:[#allocation6 + $0x4] sm:$0xf]
    %v485 = vld [vmem:[#allocation6 + $0x8] sm:$0xf]
    %v486 = vld [vmem:[#allocation6 + $0xc] sm:$0xf]
    %v487 = vld [vmem:[#allocation6 + $0x10] sm:$0xf]
    %v488 = vld [vmem:[#allocation6 + $0x14] sm:$0xf]
    %v489 = vld [vmem:[#allocation6 + $0x18] sm:$0xf]
    %v490 = vld [vmem:[#allocation6 + $0x1c] sm:$0xf]
    %v491 = vld [vmem:[#allocation6 + $0x20] sm:$0xf]
    %v492 = vld [vmem:[#allocation6 + $0x24] sm:$0xf]
    %v493 = vld [vmem:[#allocation6 + $0x28] sm:$0xf]
    %v494 = vld [vmem:[#allocation6 + $0x2c] sm:$0xf]
    %v495 = vld [vmem:[#allocation6 + $0x30] sm:$0xf]
    %v496 = vld [vmem:[#allocation6 + $0x34] sm:$0xf]
    %v497 = vld [vmem:[#allocation6 + $0x38] sm:$0xf]
    %v498 = vld [vmem:[#allocation6 + $0x3c] sm:$0xf]
    %v515 = vunpack.c.l.b16 %v483
    %v516 = vunpack.c.l.b16 %v484
    %v517 = vunpack.c.l.b16 %v485
    %v518 = vunpack.c.l.b16 %v486
    %v519 = vunpack.c.l.b16 %v487
    %v520 = vunpack.c.l.b16 %v488
    %v521 = vunpack.c.l.b16 %v489
    %v522 = vunpack.c.l.b16 %v490
    %v523 = vunpack.c.l.b16 %v491
    %v524 = vunpack.c.l.b16 %v492
    %v525 = vunpack.c.l.b16 %v493
    %v526 = vunpack.c.l.b16 %v494
    %v527 = vunpack.c.l.b16 %v495
    %v528 = vunpack.c.l.b16 %v496
    %v529 = vunpack.c.l.b16 %v497
    %v530 = vunpack.c.l.b16 %v498
    %v531 = vpack.c.b16 %v516, %v515
    %v532 = vpack.c.b16 %v518, %v517
    %v533 = vpack.c.b16 %v520, %v519
    %v534 = vpack.c.b16 %v522, %v521
    %v535 = vpack.c.b16 %v524, %v523
    %v536 = vpack.c.b16 %v526, %v525
    %v537 = vpack.c.b16 %v528, %v527
    %v538 = vpack.c.b16 %v530, %v529
    %547 = vmatprep.subr.bf16.mxu0 0
    %548 = vmatpush1.bf16.msra.mxu0 %v531
    %549 = vmatprep.subr.bf16.mxu0 0
    %550 = vmatpush1.bf16.msra.mxu0 %v532
    %551 = vmatprep.subr.bf16.mxu0 0
    %552 = vmatpush1.bf16.msra.mxu0 %v533
    %553 = vmatprep.subr.bf16.mxu0 0
    %554 = vmatpush1.bf16.msra.mxu0 %v534
    %555 = vmatprep.subr.bf16.mxu0 0
    %556 = vmatpush1.bf16.msra.mxu0 %v535
    %557 = vmatprep.subr.bf16.mxu0 0
    %558 = vmatpush1.bf16.msra.mxu0 %v536
    %559 = vmatprep.subr.bf16.mxu0 0
    %560 = vmatpush1.bf16.msra.mxu0 %v537
    %561 = vmatprep.subr.bf16.mxu0 0
    %562 = vmatpush1.bf16.msra.mxu0 %v538
    %563 = vmatprep.subr.bf16.mxu0 0
    %564 = vmatpush1.bf16.msra.mxu0 0
    %565 = vmatprep.subr.bf16.mxu0 0
    %566 = vmatpush1.bf16.msra.mxu0 0
    %567 = vmatprep.subr.bf16.mxu0 0
    %568 = vmatpush1.bf16.msra.mxu0 0
    %569 = vmatprep.subr.bf16.mxu0 0
    %570 = vmatpush1.bf16.msra.mxu0 0
    %571 = vmatprep.subr.bf16.mxu0 0
    %572 = vmatpush1.bf16.msra.mxu0 0
    %573 = vmatprep.subr.bf16.mxu0 0
    %574 = vmatpush1.bf16.msra.mxu0 0
    %575 = vmatprep.subr.bf16.mxu0 0
    %576 = vmatpush1.bf16.msra.mxu0 0
    %577 = vmatprep.subr.bf16.mxu0 0
    %578 = vmatpush1.bf16.msra.mxu0 0
    %579 = vmatprep.mubr.bf16.mxu0 0
    %580 = vmatmul.mubr.bf16.gmra.mrb[0].mxu0 %v482
    %v581 = vpop.f32.mrb[0].mxu0
    %v582 = vadd.f32 0.0, %v581
    %v583 = vpop.f32.mrb[0].mxu0
    %v584 = vpop.f32.mrb[0].mxu0
    %v585 = vpop.f32.mrb[0].mxu0
    %586 = vdwg.mxu0
    %v587 = vrot.slane %v582, 4
    %v588 = vadd.f32 %v582, %v587
    %v589 = vrot.slane %v588, 2
    %v590 = vadd.f32 %v588, %v589
    %v591 = vrot.slane %v590, 1
    %v592 = vadd.f32 %v590, %v591
    %v593 = vmul.f32 %v592, 0.125
    %v594 = vsub.f32 %v582, %v593
    %v595 = vmul.f32 %v594, %v594
    %v596 = vrot.slane %v595, 4
    %v597 = vadd.f32 %v595, %v596
    %v598 = vrot.slane %v597, 2
    %v599 = vadd.f32 %v597, %v598
    %v600 = vrot.slane %v599, 1
    %v601 = vadd.f32 %v599, %v600
    %v602 = vmul.f32 %v601, 0.125
    %v603 = vadd.f32 %v602, 1e-05
    %v604 = vrsqrt.pop %v603
    %v605 = vmul.f32 %v480, %v604
    %v606 = vmul.f32 %v593, %v605
    %v607 = vsub.f32 %v481, %v606
    %v608 = vlaneseq
    %v609 = vshrl.u32 %v608, 7
    %v610 = vsub.s32 0, %v609
    %v611 = vrot.slane %v605, %v610
    %v612 = vmul.f32 %v582, %v611
    %v613 = vlaneseq
    %v614 = vshrl.u32 %v613, 7
    %v615 = vsub.s32 0, %v614
    %v616 = vrot.slane %v607, %v615
    %v617 = vadd.f32 %v612, %v616
    %v618 = vld [vmem:[#allocation10 + $0x4] sm:$0x1]
    %v619 = vld [vmem:[#allocation10 + $0x5] sm:$0x1]
    %v620 = vpack.c.bf16 %v617, %v617
    %v621 = vld [vmem:[#allocation7] sm:$0xf]
    %v622 = vld [vmem:[#allocation7 + $0x4] sm:$0xf]
    %v623 = vld [vmem:[#allocation7 + $0x8] sm:$0xf]
    %v624 = vld [vmem:[#allocation7 + $0xc] sm:$0xf]
    %v625 = vld [vmem:[#allocation7 + $0x10] sm:$0xf]
    %v626 = vld [vmem:[#allocation7 + $0x14] sm:$0xf]
    %v627 = vld [vmem:[#allocation7 + $0x18] sm:$0xf]
    %v628 = vld [vmem:[#allocation7 + $0x1c] sm:$0xf]
    %v629 = vld [vmem:[#allocation7 + $0x20] sm:$0xf]
    %v630 = vld [vmem:[#allocation7 + $0x24] sm:$0xf]
    %v631 = vld [vmem:[#allocation7 + $0x28] sm:$0xf]
    %v632 = vld [vmem:[#allocation7 + $0x2c] sm:$0xf]
    %v633 = vld [vmem:[#allocation7 + $0x30] sm:$0xf]
    %v634 = vld [vmem:[#allocation7 + $0x34] sm:$0xf]
    %v635 = vld [vmem:[#allocation7 + $0x38] sm:$0xf]
    %v636 = vld [vmem:[#allocation7 + $0x3c] sm:$0xf]
    %v653 = vunpack.c.l.b16 %v621
    %v654 = vunpack.c.l.b16 %v622
    %v655 = vunpack.c.l.b16 %v623
    %v656 = vunpack.c.l.b16 %v624
    %v657 = vunpack.c.l.b16 %v625
    %v658 = vunpack.c.l.b16 %v626
    %v659 = vunpack.c.l.b16 %v627
    %v660 = vunpack.c.l.b16 %v628
    %v661 = vunpack.c.l.b16 %v629
    %v662 = vunpack.c.l.b16 %v630
    %v663 = vunpack.c.l.b16 %v631
    %v664 = vunpack.c.l.b16 %v632
    %v665 = vunpack.c.l.b16 %v633
    %v666 = vunpack.c.l.b16 %v634
    %v667 = vunpack.c.l.b16 %v635
    %v668 = vunpack.c.l.b16 %v636
    %v669 = vpack.c.b16 %v654, %v653
    %v670 = vpack.c.b16 %v656, %v655
    %v671 = vpack.c.b16 %v658, %v657
    %v672 = vpack.c.b16 %v660, %v659
    %v673 = vpack.c.b16 %v662, %v661
    %v674 = vpack.c.b16 %v664, %v663
    %v675 = vpack.c.b16 %v666, %v665
    %v676 = vpack.c.b16 %v668, %v667
    %685 = vmatprep.subr.bf16.mxu0 0
    %686 = vmatpush1.bf16.msra.mxu0 %v669
    %687 = vmatprep.subr.bf16.mxu0 0
    %688 = vmatpush1.bf16.msra.mxu0 %v670
    %689 = vmatprep.subr.bf16.mxu0 0
    %690 = vmatpush1.bf16.msra.mxu0 %v671
    %691 = vmatprep.subr.bf16.mxu0 0
    %692 = vmatpush1.bf16.msra.mxu0 %v672
    %693 = vmatprep.subr.bf16.mxu0 0
    %694 = vmatpush1.bf16.msra.mxu0 %v673
    %695 = vmatprep.subr.bf16.mxu0 0
    %696 = vmatpush1.bf16.msra.mxu0 %v674
    %697 = vmatprep.subr.bf16.mxu0 0
    %698 = vmatpush1.bf16.msra.mxu0 %v675
    %699 = vmatprep.subr.bf16.mxu0 0
    %700 = vmatpush1.bf16.msra.mxu0 %v676
    %701 = vmatprep.subr.bf16.mxu0 0
    %702 = vmatpush1.bf16.msra.mxu0 0
    %703 = vmatprep.subr.bf16.mxu0 0
    %704 = vmatpush1.bf16.msra.mxu0 0
    %705 = vmatprep.subr.bf16.mxu0 0
    %706 = vmatpush1.bf16.msra.mxu0 0
    %707 = vmatprep.subr.bf16.mxu0 0
    %708 = vmatpush1.bf16.msra.mxu0 0
    %709 = vmatprep.subr.bf16.mxu0 0
    %710 = vmatpush1.bf16.msra.mxu0 0
    %711 = vmatprep.subr.bf16.mxu0 0
    %712 = vmatpush1.bf16.msra.mxu0 0
    %713 = vmatprep.subr.bf16.mxu0 0
    %714 = vmatpush1.bf16.msra.mxu0 0
    %715 = vmatprep.subr.bf16.mxu0 0
    %716 = vmatpush1.bf16.msra.mxu0 0
    %717 = vmatprep.mubr.bf16.mxu0 0
    %718 = vmatmul.mubr.bf16.gmra.mrb[0].mxu0 %v620
    %v719 = vpop.f32.mrb[0].mxu0
    %v720 = vadd.f32 0.0, %v719
    %v721 = vpop.f32.mrb[0].mxu0
    %v722 = vpop.f32.mrb[0].mxu0
    %v723 = vpop.f32.mrb[0].mxu0
    %724 = vdwg.mxu0
    %v725 = vrot.slane %v720, 4
    %v726 = vadd.f32 %v720, %v725
    %v727 = vrot.slane %v726, 2
    %v728 = vadd.f32 %v726, %v727
    %v729 = vrot.slane %v728, 1
    %v730 = vadd.f32 %v728, %v729
    %v731 = vmul.f32 %v730, 0.125
    %v732 = vsub.f32 %v720, %v731
    %v733 = vmul.f32 %v732, %v732
    %v734 = vrot.slane %v733, 4
    %v735 = vadd.f32 %v733, %v734
    %v736 = vrot.slane %v735, 2
    %v737 = vadd.f32 %v735, %v736
    %v738 = vrot.slane %v737, 1
    %v739 = vadd.f32 %v737, %v738
    %v740 = vmul.f32 %v739, 0.125
    %v741 = vadd.f32 %v740, 1e-05
    %v742 = vrsqrt.pop %v741
    %v743 = vmul.f32 %v618, %v742
    %v744 = vmul.f32 %v731, %v743
    %v745 = vsub.f32 %v619, %v744
    %v746 = vlaneseq
    %v747 = vshrl.u32 %v746, 7
    %v748 = vsub.s32 0, %v747
    %v749 = vrot.slane %v743, %v748
    %v750 = vmul.f32 %v720, %v749
    %v751 = vlaneseq
    %v752 = vshrl.u32 %v751, 7
    %v753 = vsub.s32 0, %v752
    %v754 = vrot.slane %v745, %v753
    %v755 = vadd.f32 %v750, %v754
    %v756 = vmax.f32 %v755, 0.0
    %s757 = scalar_lea.vmem [#allocation10], 6
    %v758 = vld [vmem:[%s757] ss:$2 sm:$0xf]
    %s759 = scalar_lea.vmem [#allocation10], 7
    %v760 = vld [vmem:[%s759] ss:$2 sm:$0xf]
    %v761 = vpack.c.bf16 %v756, %v756
    %v762 = vld [vmem:[#allocation9] sm:$0xff]
    %v763 = vld [vmem:[#allocation9 + $0x8] sm:$0xff]
    %v764 = vld [vmem:[#allocation9 + $0x10] sm:$0xff]
    %v765 = vld [vmem:[#allocation9 + $0x18] sm:$0xff]
    %v766 = vld [vmem:[#allocation9 + $0x20] sm:$0xff]
    %v767 = vld [vmem:[#allocation9 + $0x28] sm:$0xff]
    %v768 = vld [vmem:[#allocation9 + $0x30] sm:$0xff]
    %v769 = vld [vmem:[#allocation9 + $0x38] sm:$0xff]
    %v770 = vld [vmem:[#allocation9 + $0x40] sm:$0xff]
    %v771 = vld [vmem:[#allocation9 + $0x48] sm:$0xff]
    %v772 = vld [vmem:[#allocation9 + $0x50] sm:$0xff]
    %v773 = vld [vmem:[#allocation9 + $0x58] sm:$0xff]
    %v774 = vld [vmem:[#allocation9 + $0x60] sm:$0xff]
    %v775 = vld [vmem:[#allocation9 + $0x68] sm:$0xff]
    %v776 = vld [vmem:[#allocation9 + $0x70] sm:$0xff]
    %v777 = vld [vmem:[#allocation9 + $0x78] sm:$0xff]
    %v778 = vld [vmem:[#allocation9 + $0x80] sm:$0xff]
    %v779 = vld [vmem:[#allocation9 + $0x88] sm:$0xff]
    %v780 = vld [vmem:[#allocation9 + $0x90] sm:$0xff]
    %v781 = vld [vmem:[#allocation9 + $0x98] sm:$0xff]
    %v782 = vld [vmem:[#allocation9 + $0xa0] sm:$0xff]
    %v783 = vld [vmem:[#allocation9 + $0xa8] sm:$0xff]
    %v784 = vld [vmem:[#allocation9 + $0xb0] sm:$0xff]
    %v785 = vld [vmem:[#allocation9 + $0xb8] sm:$0xff]
    %v786 = vld [vmem:[#allocation9 + $0xc0] sm:$0xff]
    %v787 = vld [vmem:[#allocation9 + $0xc8] sm:$0xff]
    %v788 = vld [vmem:[#allocation9 + $0xd0] sm:$0xff]
    %v789 = vld [vmem:[#allocation9 + $0xd8] sm:$0xff]
    %v790 = vld [vmem:[#allocation9 + $0xe0] sm:$0xff]
    %v791 = vld [vmem:[#allocation9 + $0xe8] sm:$0xff]
    %v792 = vld [vmem:[#allocation9 + $0xf0] sm:$0xff]
    %v793 = vld [vmem:[#allocation9 + $0xf8] sm:$0xff]
    %v826 = vunpack.c.l.b16 %v762
    %v827 = vunpack.c.h.b16 %v762
    %v828 = vunpack.c.l.b16 %v763
    %v829 = vunpack.c.h.b16 %v763
    %v830 = vunpack.c.l.b16 %v764
    %v831 = vunpack.c.h.b16 %v764
    %v832 = vunpack.c.l.b16 %v765
    %v833 = vunpack.c.h.b16 %v765
    %v834 = vunpack.c.l.b16 %v766
    %v835 = vunpack.c.h.b16 %v766
    %v836 = vunpack.c.l.b16 %v767
    %v837 = vunpack.c.h.b16 %v767
    %v838 = vunpack.c.l.b16 %v768
    %v839 = vunpack.c.h.b16 %v768
    %v840 = vunpack.c.l.b16 %v769
    %v841 = vunpack.c.h.b16 %v769
    %v842 = vunpack.c.l.b16 %v770
    %v843 = vunpack.c.h.b16 %v770
    %v844 = vunpack.c.l.b16 %v771
    %v845 = vunpack.c.h.b16 %v771
    %v846 = vunpack.c.l.b16 %v772
    %v847 = vunpack.c.h.b16 %v772
    %v848 = vunpack.c.l.b16 %v773
    %v849 = vunpack.c.h.b16 %v773
    %v850 = vunpack.c.l.b16 %v774
    %v851 = vunpack.c.h.b16 %v774
    %v852 = vunpack.c.l.b16 %v775
    %v853 = vunpack.c.h.b16 %v775
    %v854 = vunpack.c.l.b16 %v776
    %v855 = vunpack.c.h.b16 %v776
    %v856 = vunpack.c.l.b16 %v777
    %v857 = vunpack.c.h.b16 %v777
    %v858 = vunpack.c.l.b16 %v778
    %v859 = vunpack.c.h.b16 %v778
    %v860 = vunpack.c.l.b16 %v779
    %v861 = vunpack.c.h.b16 %v779
    %v862 = vunpack.c.l.b16 %v780
    %v863 = vunpack.c.h.b16 %v780
    %v864 = vunpack.c.l.b16 %v781
    %v865 = vunpack.c.h.b16 %v781
    %v866 = vunpack.c.l.b16 %v782
    %v867 = vunpack.c.h.b16 %v782
    %v868 = vunpack.c.l.b16 %v783
    %v869 = vunpack.c.h.b16 %v783
    %v870 = vunpack.c.l.b16 %v784
    %v871 = vunpack.c.h.b16 %v784
    %v872 = vunpack.c.l.b16 %v785
    %v873 = vunpack.c.h.b16 %v785
    %v874 = vunpack.c.l.b16 %v786
    %v875 = vunpack.c.h.b16 %v786
    %v876 = vunpack.c.l.b16 %v787
    %v877 = vunpack.c.h.b16 %v787
    %v878 = vunpack.c.l.b16 %v788
    %v879 = vunpack.c.h.b16 %v788
    %v880 = vunpack.c.l.b16 %v789
    %v881 = vunpack.c.h.b16 %v789
    %v882 = vunpack.c.l.b16 %v790
    %v883 = vunpack.c.h.b16 %v790
    %v884 = vunpack.c.l.b16 %v791
    %v885 = vunpack.c.h.b16 %v791
    %v886 = vunpack.c.l.b16 %v792
    %v887 = vunpack.c.h.b16 %v792
    %v888 = vunpack.c.l.b16 %v793
    %v889 = vunpack.c.h.b16 %v793
    %v890 = vpack.c.b16 %v830, %v826
    %v891 = vpack.c.b16 %v831, %v827
    %v892 = vpack.c.b16 %v832, %v828
    %v893 = vpack.c.b16 %v833, %v829
    %v894 = vpack.c.b16 %v838, %v834
    %v895 = vpack.c.b16 %v839, %v835
    %v896 = vpack.c.b16 %v840, %v836
    %v897 = vpack.c.b16 %v841, %v837
    %v898 = vpack.c.b16 %v846, %v842
    %v899 = vpack.c.b16 %v847, %v843
    %v900 = vpack.c.b16 %v848, %v844
    %v901 = vpack.c.b16 %v849, %v845
    %v902 = vpack.c.b16 %v854, %v850
    %v903 = vpack.c.b16 %v855, %v851
    %v904 = vpack.c.b16 %v856, %v852
    %v905 = vpack.c.b16 %v857, %v853
    %v906 = vpack.c.b16 %v862, %v858
    %v907 = vpack.c.b16 %v863, %v859
    %v908 = vpack.c.b16 %v864, %v860
    %v909 = vpack.c.b16 %v865, %v861
    %v910 = vpack.c.b16 %v870, %v866
    %v911 = vpack.c.b16 %v871, %v867
    %v912 = vpack.c.b16 %v872, %v868
    %v913 = vpack.c.b16 %v873, %v869
    %v914 = vpack.c.b16 %v878, %v874
    %v915 = vpack.c.b16 %v879, %v875
    %v916 = vpack.c.b16 %v880, %v876
    %v917 = vpack.c.b16 %v881, %v877
    %v918 = vpack.c.b16 %v886, %v882
    %v919 = vpack.c.b16 %v887, %v883
    %v920 = vpack.c.b16 %v888, %v884
    %v921 = vpack.c.b16 %v889, %v885
    %954 = vmatprep.subr.bf16.mxu0 %v891
    %955 = vmatpush1.bf16.msra.mxu0 %v890
    %956 = vmatprep.subr.bf16.mxu0 %v895
    %957 = vmatpush1.bf16.msra.mxu0 %v894
    %958 = vmatprep.subr.bf16.mxu0 %v899
    %959 = vmatpush1.bf16.msra.mxu0 %v898
    %960 = vmatprep.subr.bf16.mxu0 %v903
    %961 = vmatpush1.bf16.msra.mxu0 %v902
    %962 = vmatprep.subr.bf16.mxu0 %v907
    %963 = vmatpush1.bf16.msra.mxu0 %v906
    %964 = vmatprep.subr.bf16.mxu0 %v911
    %965 = vmatpush1.bf16.msra.mxu0 %v910
    %966 = vmatprep.subr.bf16.mxu0 %v915
    %967 = vmatpush1.bf16.msra.mxu0 %v914
    %968 = vmatprep.subr.bf16.mxu0 %v919
    %969 = vmatpush1.bf16.msra.mxu0 %v918
    %970 = vmatprep.subr.bf16.mxu0 0
    %971 = vmatpush1.bf16.msra.mxu0 0
    %972 = vmatprep.subr.bf16.mxu0 0
    %973 = vmatpush1.bf16.msra.mxu0 0
    %974 = vmatprep.subr.bf16.mxu0 0
    %975 = vmatpush1.bf16.msra.mxu0 0
    %976 = vmatprep.subr.bf16.mxu0 0
    %977 = vmatpush1.bf16.msra.mxu0 0
    %978 = vmatprep.subr.bf16.mxu0 0
    %979 = vmatpush1.bf16.msra.mxu0 0
    %980 = vmatprep.subr.bf16.mxu0 0
    %981 = vmatpush1.bf16.msra.mxu0 0
    %982 = vmatprep.subr.bf16.mxu0 0
    %983 = vmatpush1.bf16.msra.mxu0 0
    %984 = vmatprep.subr.bf16.mxu0 0
    %985 = vmatpush1.bf16.msra.mxu0 0
    %986 = vmatprep.mubr.bf16.mxu0 0
    %987 = vmatmul.mubr.bf16.gmra.mrb[0].mxu0 %v761
    %v988 = vpop.f32.mrb[0].mxu0
    %v989 = vadd.f32 0.0, %v988
    %v990 = vpop.f32.mrb[0].mxu0
    %v991 = vadd.f32 0.0, %v990
    %v992 = vpop.f32.mrb[0].mxu0
    %v993 = vpop.f32.mrb[0].mxu0
    %994 = vdwg.mxu0
    %995 = vmatprep.subr.bf16.mxu0 %v893
    %996 = vmatpush1.bf16.msra.mxu0 %v892
    %997 = vmatprep.subr.bf16.mxu0 %v897
    %998 = vmatpush1.bf16.msra.mxu0 %v896
    %999 = vmatprep.subr.bf16.mxu0 %v901
    %1000 = vmatpush1.bf16.msra.mxu0 %v900
    %1001 = vmatprep.subr.bf16.mxu0 %v905
    %1002 = vmatpush1.bf16.msra.mxu0 %v904
    %1003 = vmatprep.subr.bf16.mxu0 %v909
    %1004 = vmatpush1.bf16.msra.mxu0 %v908
    %1005 = vmatprep.subr.bf16.mxu0 %v913
    %1006 = vmatpush1.bf16.msra.mxu0 %v912
    %1007 = vmatprep.subr.bf16.mxu0 %v917
    %1008 = vmatpush1.bf16.msra.mxu0 %v916
    %1009 = vmatprep.subr.bf16.mxu0 %v921
    %1010 = vmatpush1.bf16.msra.mxu0 %v920
    %1011 = vmatprep.subr.bf16.mxu0 0
    %1012 = vmatpush1.bf16.msra.mxu0 0
    %1013 = vmatprep.subr.bf16.mxu0 0
    %1014 = vmatpush1.bf16.msra.mxu0 0
    %1015 = vmatprep.subr.bf16.mxu0 0
    %1016 = vmatpush1.bf16.msra.mxu0 0
    %1017 = vmatprep.subr.bf16.mxu0 0
    %1018 = vmatpush1.bf16.msra.mxu0 0
    %1019 = vmatprep.subr.bf16.mxu0 0
    %1020 = vmatpush1.bf16.msra.mxu0 0
    %1021 = vmatprep.subr.bf16.mxu0 0
    %1022 = vmatpush1.bf16.msra.mxu0 0
    %1023 = vmatprep.subr.bf16.mxu0 0
    %1024 = vmatpush1.bf16.msra.mxu0 0
    %1025 = vmatprep.subr.bf16.mxu0 0
    %1026 = vmatpush1.bf16.msra.mxu0 0
    %1027 = vmatprep.mubr.bf16.mxu0 0
    %1028 = vmatmul.mubr.bf16.gmra.mrb[0].mxu0 %v761
    %v1029 = vpop.f32.mrb[0].mxu0
    %v1030 = vadd.f32 0.0, %v1029
    %v1031 = vpop.f32.mrb[0].mxu0
    %v1032 = vadd.f32 0.0, %v1031
    %v1033 = vpop.f32.mrb[0].mxu0
    %v1034 = vpop.f32.mrb[0].mxu0
    %1035 = vdwg.mxu0
    %v1036 = vrot.slane %v989, 4
    %v1037 = vadd.f32 %v989, %v1036
    %v1038 = vrot.slane %v1037, 2
    %v1039 = vadd.f32 %v1037, %v1038
    %v1040 = vrot.slane %v1039, 1
    %v1041 = vadd.f32 %v1039, %v1040
    %v1042 = vrot.slane %v991, 4
    %v1043 = vadd.f32 %v991, %v1042
    %v1044 = vrot.slane %v1043, 2
    %v1045 = vadd.f32 %v1043, %v1044
    %v1046 = vrot.slane %v1045, 1
    %v1047 = vadd.f32 %v1045, %v1046
    %v1048 = vrot.slane %v1030, 4
    %v1049 = vadd.f32 %v1030, %v1048
    %v1050 = vrot.slane %v1049, 2
    %v1051 = vadd.f32 %v1049, %v1050
    %v1052 = vrot.slane %v1051, 1
    %v1053 = vadd.f32 %v1051, %v1052
    %v1054 = vrot.slane %v1032, 4
    %v1055 = vadd.f32 %v1032, %v1054
    %v1056 = vrot.slane %v1055, 2
    %v1057 = vadd.f32 %v1055, %v1056
    %v1058 = vrot.slane %v1057, 1
    %v1059 = vadd.f32 %v1057, %v1058
    %v1060 = vmul.f32 %v1041, 0.125
    %v1061 = vmul.f32 %v1047, 0.125
    %v1062 = vmul.f32 %v1053, 0.125
    %v1063 = vmul.f32 %v1059, 0.125
    %v1064 = vsub.f32 %v989, %v1060
    %v1065 = vsub.f32 %v991, %v1061
    %v1066 = vsub.f32 %v1030, %v1062
    %v1067 = vsub.f32 %v1032, %v1063
    %v1068 = vmul.f32 %v1064, %v1064
    %v1069 = vmul.f32 %v1065, %v1065
    %v1070 = vmul.f32 %v1066, %v1066
    %v1071 = vmul.f32 %v1067, %v1067
    %v1072 = vrot.slane %v1068, 4
    %v1073 = vadd.f32 %v1068, %v1072
    %v1074 = vrot.slane %v1073, 2
    %v1075 = vadd.f32 %v1073, %v1074
    %v1076 = vrot.slane %v1075, 1
    %v1077 = vadd.f32 %v1075, %v1076
    %v1078 = vrot.slane %v1069, 4
    %v1079 = vadd.f32 %v1069, %v1078
    %v1080 = vrot.slane %v1079, 2
    %v1081 = vadd.f32 %v1079, %v1080
    %v1082 = vrot.slane %v1081, 1
    %v1083 = vadd.f32 %v1081, %v1082
    %v1084 = vrot.slane %v1070, 4
    %v1085 = vadd.f32 %v1070, %v1084
    %v1086 = vrot.slane %v1085, 2
    %v1087 = vadd.f32 %v1085, %v1086
    %v1088 = vrot.slane %v1087, 1
    %v1089 = vadd.f32 %v1087, %v1088
    %v1090 = vrot.slane %v1071, 4
    %v1091 = vadd.f32 %v1071, %v1090
    %v1092 = vrot.slane %v1091, 2
    %v1093 = vadd.f32 %v1091, %v1092
    %v1094 = vrot.slane %v1093, 1
    %v1095 = vadd.f32 %v1093, %v1094
    %v1096 = vmul.f32 %v1077, 0.125
    %v1097 = vmul.f32 %v1083, 0.125
    %v1098 = vmul.f32 %v1089, 0.125
    %v1099 = vmul.f32 %v1095, 0.125
    %v1100 = vadd.f32 %v1096, 1e-05
    %v1101 = vadd.f32 %v1097, 1e-05
    %v1102 = vadd.f32 %v1098, 1e-05
    %v1103 = vadd.f32 %v1099, 1e-05
    %v1104 = vrsqrt.pop %v1100
    %v1105 = vrsqrt.pop %v1101
    %v1106 = vrsqrt.pop %v1102
    %v1107 = vrsqrt.pop %v1103
    %v1112 = vcombine.low %v1104, %v1105
    %v1113 = vcombine.low %v1106, %v1107
    %v1115 = vunpack.c.l.s4 1966171168
    %v1116 = vunpack.c.0.s8 %v1115
    %v1117 = vlaneseq
    %v1118 = vshrl.u32 %v1117, 7
    %v1119 = vsub.s32 %v1116, %v1118
    %v1120 = vrot.slane %v1112, %v1119
    %v1122 = vunpack.c.l.s4 1966171168
    %v1123 = vunpack.c.0.s8 %v1122
    %v1124 = vlaneseq
    %v1125 = vshrl.u32 %v1124, 7
    %v1126 = vsub.s32 %v1123, %v1125
    %v1127 = vrot.slane %v1113, %v1126
    %v1128 = vcombine.low %v1120, %v1127
    %v1130 = vunpack.c.l.s4 1966171168
    %v1131 = vunpack.c.0.s8 %v1130
    %v1132 = vlaneseq
    %v1133 = vshrl.u32 %v1132, 7
    %v1134 = vsub.s32 %v1131, %v1133
    %v1135 = vrot.slane %v1128, %v1134
    %v1137 = vmul.f32 %v758, %v1135
    %v1139 = vlaneseq
    %v1140 = vshrl.u32 %v1139, 7
    %v1141 = vsub.s32 0, %v1140
    %v1142 = vrot.slane %v1137, %v1141
    %v1143 = vlaneseq
    %v1144 = vshrl.u32 %v1143, 7
    %v1145 = vsub.s32 1, %v1144
    %v1146 = vrot.slane %v1137, %v1145
    %v1147 = vlaneseq
    %v1148 = vshrl.u32 %v1147, 7
    %v1149 = vsub.s32 2, %v1148
    %v1150 = vrot.slane %v1137, %v1149
    %v1151 = vlaneseq
    %v1152 = vshrl.u32 %v1151, 7
    %v1153 = vsub.s32 3, %v1152
    %v1154 = vrot.slane %v1137, %v1153
    %v1159 = vmul.f32 %v1060, %v1142
    %v1160 = vmul.f32 %v1061, %v1146
    %v1161 = vmul.f32 %v1062, %v1150
    %v1162 = vmul.f32 %v1063, %v1154
    %v1167 = vcombine.low %v1159, %v1160
    %v1168 = vcombine.low %v1161, %v1162
    %v1170 = vunpack.c.l.s4 1966171168
    %v1171 = vunpack.c.0.s8 %v1170
    %v1172 = vlaneseq
    %v1173 = vshrl.u32 %v1172, 7
    %v1174 = vsub.s32 %v1171, %v1173
    %v1175 = vrot.slane %v1167, %v1174
    %v1177 = vunpack.c.l.s4 1966171168
    %v1178 = vunpack.c.0.s8 %v1177
    %v1179 = vlaneseq
    %v1180 = vshrl.u32 %v1179, 7
    %v1181 = vsub.s32 %v1178, %v1180
    %v1182 = vrot.slane %v1168, %v1181
    %v1183 = vcombine.low %v1175, %v1182
    %v1185 = vunpack.c.l.s4 1966171168
    %v1186 = vunpack.c.0.s8 %v1185
    %v1187 = vlaneseq
    %v1188 = vshrl.u32 %v1187, 7
    %v1189 = vsub.s32 %v1186, %v1188
    %v1190 = vrot.slane %v1183, %v1189
    %v1192 = vsub.f32 %v760, %v1190
    %v1193 = vmul.f32 %v989, %v1142
    %v1194 = vmul.f32 %v991, %v1146
    %v1195 = vmul.f32 %v1030, %v1150
    %v1196 = vmul.f32 %v1032, %v1154
    %v1198 = vlaneseq
    %v1199 = vshrl.u32 %v1198, 7
    %v1200 = vsub.s32 0, %v1199
    %v1201 = vrot.slane %v1192, %v1200
    %v1202 = vlaneseq
    %v1203 = vshrl.u32 %v1202, 7
    %v1204 = vsub.s32 1, %v1203
    %v1205 = vrot.slane %v1192, %v1204
    %v1206 = vlaneseq
    %v1207 = vshrl.u32 %v1206, 7
    %v1208 = vsub.s32 2, %v1207
    %v1209 = vrot.slane %v1192, %v1208
    %v1210 = vlaneseq
    %v1211 = vshrl.u32 %v1210, 7
    %v1212 = vsub.s32 3, %v1211
    %v1213 = vrot.slane %v1192, %v1212
    %v1218 = vadd.f32 %v1193, %v1201
    %v1219 = vadd.f32 %v1194, %v1205
    %v1220 = vadd.f32 %v1195, %v1209
    %v1221 = vadd.f32 %v1196, %v1213
    %1222 = vst [vmem:[%s6] sm:$0xff] %v617
    %1223 = vst [vmem:[%s6 + $0x8] sm:$0xff] %v1218
    %1224 = vst [vmem:[%s6 + $0x10] sm:$0xff] %v1219
    %1225 = vst [vmem:[%s6 + $0x18] sm:$0xff] %v1220
    %1226 = vst [vmem:[%s6 + $0x20] sm:$0xff] %v1221
    // Predicated region
    $region50: #{bottleneck_forward.1} parent=1 // pred_check
      _
    $region51: #{bottleneck_forward.1} parent=1 // pred_check_branch
      %1228 = sbr.rel (0) target = $region53
    $region52: #{bottleneck_forward.1} parent=1 // pred_region
      _
    $region53: #{bottleneck_forward.1} parent=1 // pred_fallthru
      _
    // Predicated region
    $region54: #{bottleneck_forward.1} parent=1 // pred_check
      _
    $region55: #{bottleneck_forward.1} parent=1 // pred_check_branch
      %1230 = sbr.rel (0) target = $region57
    $region56: #{bottleneck_forward.1} parent=1 // pred_region
      _
    $region57: #{bottleneck_forward.1} parent=1 // pred_fallthru
      _
    %1231 = vsyncpa [#allocation3], 1
    %1232 = vsyncpa [#allocation5], 1
    %1233 = vsyncpa [#allocation8], 1
    %1234 = vsyncpa [#allocation11], 1

</llo_original>
